<compile_context>
chip_gen: v5e
topology: v5e:2x2
jax: 0.10.0
libtpu: 0.0.40
codegen_flags: <defaults>
</compile_context>

<pallas_src>
import jax
import jax.numpy as jnp
import numpy as np
from jax.experimental import pallas as pl
from jax.experimental.pallas import tpu as pltpu


def generate_dwt_kernel_params(n_channels: int, key):
    """Mirror ConvHaarForward.generate_dwt_kernel (structured weight + Conv2d bias)."""
    # weight: [4c, c, 2, 2]; the k + 4*k indexing quirk raises for n_channels >= 5,
    # exactly like the reference module.
    w = np.zeros((n_channels * 4, n_channels, 2, 2), dtype=np.float32)
    for k in range(n_channels):
        w[k + 4 * k, k, :, :] = 0.25
    # Conv2d default bias: U(-1/sqrt(fan_in), 1/sqrt(fan_in)), fan_in = c*2*2.
    fan_in = n_channels * 2 * 2
    bound = 1.0 / np.sqrt(fan_in)
    bias = jax.random.uniform(key, (n_channels * 4,), jnp.float32, -bound, bound)
    return jnp.asarray(w), bias


def _haar_dwt_kernel(bias_ref, x_ref, r_ref, p_ref, o_ref):
    # bias_ref: SMEM [4c] f32
    # x_ref:    VMEM [1, c, 2t, w]   (native NCHW input block)
    # r_ref:    VMEM [t, 2t]         row-pair sum matrix (entries 0/1)
    # p_ref:    VMEM [w, ow]         0.25-weighted column-pair sum matrix
    # o_ref:    VMEM [1, 4c, t, ow]  (native NCHW output block)
    c = x_ref.shape[1]
    n_oc = o_ref.shape[1]
    t, ow = o_ref.shape[2], o_ref.shape[3]

    r_mat = r_ref[...]
    p_mat = p_ref[...]

    # Data channels: out[5k] = 0.25 * (2x2 window sum of input channel k) + bias[5k].
    for k in range(c):
        xk = x_ref[0, k, :, :].astype(jnp.float32)                          # [2t, w]
        row_sum = jnp.dot(r_mat, xk, preferred_element_type=jnp.float32)    # [t, w]
        ll = jnp.dot(row_sum, p_mat, preferred_element_type=jnp.float32)    # [t, ow]
        o_ref[0, 5 * k, :, :] = (ll + bias_ref[5 * k]).astype(o_ref.dtype)

    # All other output channels have all-zero weights -> pure bias broadcast.
    data_channels = {5 * k for k in range(c)}
    for j in range(n_oc):
        if j in data_channels:
            continue
        o_ref[0, j, :, :] = jnp.full((t, ow), bias_ref[j], dtype=o_ref.dtype)


def _pick_row_tile(batch, c, oh, w, itemsize, budget_bytes):
    """Output-row tile t: as large as the VMEM budget allows, multiple of 8 unless t == oh."""
    itemsize = max(int(itemsize), 4)
    # double-buffered x block + out block ~= 8 * c * t * w * itemsize bytes
    per_row = 8 * c * w * itemsize
    t_cap = max(8, budget_bytes // per_row)
    if oh <= t_cap:
        t = oh
    else:
        t = max(8, (t_cap // 8) * 8)
    # Keep >= 2 grid steps when possible so both v7x TensorCores get work.
    n_steps = batch * (-(-oh // t))
    if n_steps < 2 and oh >= 16:
        t = max(8, ((oh // 2) // 8) * 8)
    return int(t)


def conv_haar_forward(x, bias, *, vmem_budget_bytes=12 * 1024 * 1024):
    """x: [b, c, h, w] NCHW, bias: [4c]  ->  out: [b, 4c, h//2, w//2] NCHW."""
    b, c, h, w = x.shape
    if c > 4:
        # The reference module's weight init indexes out of bounds (IndexError)
        # for n_channels >= 5; mirror that restriction explicitly.
        raise ValueError("ConvHaarForward weight init only supports n_channels <= 4")
    if h < 2 or w < 2:
        raise ValueError("spatial dims must be >= 2")
    if bias.shape != (4 * c,):
        raise ValueError("bias must have shape (4*c,)")

    oh, ow = h // 2, w // 2  # stride-2 VALID conv drops a trailing odd row/col
    t = _pick_row_tile(b, c, oh, w, x.dtype.itemsize, vmem_budget_bytes)

    # Odd h edge case: if the x block's second-minor dim (2t) would violate the
    # (divisible-by-8 or full-dim) rule, drop the unused last input row.
    if (2 * t != h) and ((2 * t) % 8 != 0):
        x = x[:, :, : 2 * oh, :]
        h = 2 * oh

    n_i = -(-oh // t)

    # Tiny constant fold matrices (compile-time constants, negligible HBM traffic).
    r_np = (np.arange(t)[:, None] == (np.arange(2 * t)[None, :] // 2)).astype(np.float32)
    p_np = 0.25 * ((np.arange(w)[:, None] // 2) == np.arange(ow)[None, :]).astype(np.float32)
    r_mat = jnp.asarray(r_np)
    p_mat = jnp.asarray(p_np)
    bias_f32 = bias.astype(jnp.float32)

    return pl.pallas_call(
        _haar_dwt_kernel,
        out_shape=jax.ShapeDtypeStruct((b, 4 * c, oh, ow), x.dtype),
        grid_spec=pltpu.PrefetchScalarGridSpec(
            num_scalar_prefetch=0,
            grid=(b, n_i),
            in_specs=[
                pl.BlockSpec(memory_space=pltpu.MemorySpace.SMEM),            # bias [4c]
                pl.BlockSpec((1, c, 2 * t, w), lambda bi, i: (bi, 0, i, 0)),  # x, NCHW block
                pl.BlockSpec((t, 2 * t), lambda bi, i: (0, 0)),               # R
                pl.BlockSpec((w, ow), lambda bi, i: (0, 0)),                  # P
            ],
            out_specs=pl.BlockSpec((1, 4 * c, t, ow), lambda bi, i: (bi, 0, i, 0)),
        ),
        compiler_params=pltpu.CompilerParams(
            dimension_semantics=("parallel", "parallel"),
            vmem_limit_bytes=32 * 1024 * 1024,   # safe on v5e/v6e (128 MiB) and v7x (64 MiB)
        ),
    )(bias_f32, x, r_mat, p_mat)


if __name__ == "__main__":
    key = jax.random.PRNGKey(0)
    k_x, k_b = jax.random.split(key)

    n_channels = 4
    x = jax.random.normal(k_x, (2, n_channels, 16, 16), jnp.float32)
    weight, bias = generate_dwt_kernel_params(n_channels, k_b)

    out = conv_haar_forward(x, bias)
    out = jax.block_until_ready(out)
    assert out.shape == (2, n_channels * 4, 8, 8), out.shape

    # Reference: the actual Conv2d forward (stride-2 VALID conv + bias) with the
    # module's structured weight.
    ref = jax.lax.conv_general_dilated(
        x, weight, window_strides=(2, 2), padding="VALID",
        dimension_numbers=("NCHW", "OIHW", "NCHW"),
    ) + bias.reshape(1, -1, 1, 1)
    np.testing.assert_allclose(np.asarray(out), np.asarray(ref), rtol=1e-5, atol=1e-5)

    print("KERNEL_OK")
</pallas_src>

<mosaic_0001>
module attributes {stable_mosaic.version = 11 : i64} {
  func.func @_haar_dwt_kernel(%arg0: i32, %arg1: i32, %arg2: memref<16xf32, #tpu.memory_space<smem>>, %arg3: memref<1x4x16x16xf32, #tpu.memory_space<vmem>>, %arg4: memref<8x16xf32, #tpu.memory_space<vmem>>, %arg5: memref<16x8xf32, #tpu.memory_space<vmem>>, %arg6: memref<1x16x8x8xf32, #tpu.memory_space<vmem>>) attributes {dimension_semantics = [#tpu.dimension_semantics<parallel>, #tpu.dimension_semantics<parallel>], iteration_bounds = array<i64: 2, 1>, scalar_prefetch = 0 : i64, scratch_operands = 0 : i64, tpu.core_type = #tpu.core_type<tc>, window_params = [{transform_indices = @transform_0, window_bounds = array<i64: 16>}, {transform_indices = @transform_1, window_bounds = array<i64: 1, 4, 16, 16>}, {pipeline_mode = #tpu.pipeline_mode<synchronous>, transform_indices = @transform_2, window_bounds = array<i64: 8, 16>}, {pipeline_mode = #tpu.pipeline_mode<synchronous>, transform_indices = @transform_3, window_bounds = array<i64: 16, 8>}, {transform_indices = @transform_4, window_bounds = array<i64: 1, 16, 8, 8>}]} {
    %c0 = arith.constant 0 : index
    %c0_0 = arith.constant 0 : index
    %0 = vector.load %arg4[%c0, %c0_0] : memref<8x16xf32, #tpu.memory_space<vmem>>, vector<8x16xf32>
    %c0_1 = arith.constant 0 : index
    %c0_2 = arith.constant 0 : index
    %1 = vector.load %arg5[%c0_1, %c0_2] : memref<16x8xf32, #tpu.memory_space<vmem>>, vector<16x8xf32>
    %c0_3 = arith.constant 0 : index
    %c0_4 = arith.constant 0 : index
    %c0_5 = arith.constant 0 : index
    %c0_6 = arith.constant 0 : index
    %2 = vector.load %arg3[%c0_3, %c0_4, %c0_5, %c0_6] : memref<1x4x16x16xf32, #tpu.memory_space<vmem>>, vector<1x1x16x16xf32>
    %3 = vector.shape_cast %2 : vector<1x1x16x16xf32> to vector<16x16xf32>
    %cst = arith.constant dense<0.000000e+00> : vector<8x16xf32>
    %4 = tpu.matmul %0, %3, %cst {dimension_numbers = #tpu.dot_dimension_numbers<[1], [0], [0], [1], [0, 0, 1, 1], [], []>} : vector<8x16xf32>, vector<16x16xf32>, vector<8x16xf32> -> vector<8x16xf32>
    %cst_7 = arith.constant dense<0.000000e+00> : vector<8x8xf32>
    %5 = tpu.matmul %4, %1, %cst_7 {dimension_numbers = #tpu.dot_dimension_numbers<[1], [0], [0], [1], [0, 0, 1, 1], [], []>} : vector<8x16xf32>, vector<16x8xf32>, vector<8x8xf32> -> vector<8x8xf32>
    %c0_8 = arith.constant 0 : index
    %6 = memref.load %arg2[%c0_8] : memref<16xf32, #tpu.memory_space<smem>>
    %7 = vector.broadcast %6 : f32 to vector<8x8xf32>
    %8 = arith.addf %5, %7 : vector<8x8xf32>
    %c0_9 = arith.constant 0 : index
    %c0_10 = arith.constant 0 : index
    %c0_11 = arith.constant 0 : index
    %c0_12 = arith.constant 0 : index
    %9 = vector.load %arg6[%c0_9, %c0_10, %c0_11, %c0_12] : memref<1x16x8x8xf32, #tpu.memory_space<vmem>>, vector<1x1x8x8xf32>
    %10 = vector.shape_cast %9 : vector<1x1x8x8xf32> to vector<8x8xf32>
    %11 = vector.shape_cast %8 : vector<8x8xf32> to vector<1x1x8x8xf32>
    tpu.vector_store %arg6[%c0_9, %c0_10, %c0_11, %c0_12], %11 {strides = array<i32>} : memref<1x16x8x8xf32, #tpu.memory_space<vmem>>, vector<1x1x8x8xf32>,
    %c0_13 = arith.constant 0 : index
    %c1 = arith.constant 1 : index
    %c0_14 = arith.constant 0 : index
    %c0_15 = arith.constant 0 : index
    %12 = vector.load %arg3[%c0_13, %c1, %c0_14, %c0_15] : memref<1x4x16x16xf32, #tpu.memory_space<vmem>>, vector<1x1x16x16xf32>
    %13 = vector.shape_cast %12 : vector<1x1x16x16xf32> to vector<16x16xf32>
    %cst_16 = arith.constant dense<0.000000e+00> : vector<8x16xf32>
    %14 = tpu.matmul %0, %13, %cst_16 {dimension_numbers = #tpu.dot_dimension_numbers<[1], [0], [0], [1], [0, 0, 1, 1], [], []>} : vector<8x16xf32>, vector<16x16xf32>, vector<8x16xf32> -> vector<8x16xf32>
    %cst_17 = arith.constant dense<0.000000e+00> : vector<8x8xf32>
    %15 = tpu.matmul %14, %1, %cst_17 {dimension_numbers = #tpu.dot_dimension_numbers<[1], [0], [0], [1], [0, 0, 1, 1], [], []>} : vector<8x16xf32>, vector<16x8xf32>, vector<8x8xf32> -> vector<8x8xf32>
    %c5 = arith.constant 5 : index
    %16 = memref.load %arg2[%c5] : memref<16xf32, #tpu.memory_space<smem>>
    %17 = vector.broadcast %16 : f32 to vector<8x8xf32>
    %18 = arith.addf %15, %17 : vector<8x8xf32>
    %c0_18 = arith.constant 0 : index
    %c5_19 = arith.constant 5 : index
    %c0_20 = arith.constant 0 : index
    %c0_21 = arith.constant 0 : index
    %19 = vector.load %arg6[%c0_18, %c5_19, %c0_20, %c0_21] : memref<1x16x8x8xf32, #tpu.memory_space<vmem>>, vector<1x1x8x8xf32>
    %20 = vector.shape_cast %19 : vector<1x1x8x8xf32> to vector<8x8xf32>
    %21 = vector.shape_cast %18 : vector<8x8xf32> to vector<1x1x8x8xf32>
    tpu.vector_store %arg6[%c0_18, %c5_19, %c0_20, %c0_21], %21 {strides = array<i32>} : memref<1x16x8x8xf32, #tpu.memory_space<vmem>>, vector<1x1x8x8xf32>,
    %c0_22 = arith.constant 0 : index
    %c2 = arith.constant 2 : index
    %c0_23 = arith.constant 0 : index
    %c0_24 = arith.constant 0 : index
    %22 = vector.load %arg3[%c0_22, %c2, %c0_23, %c0_24] : memref<1x4x16x16xf32, #tpu.memory_space<vmem>>, vector<1x1x16x16xf32>
    %23 = vector.shape_cast %22 : vector<1x1x16x16xf32> to vector<16x16xf32>
    %cst_25 = arith.constant dense<0.000000e+00> : vector<8x16xf32>
    %24 = tpu.matmul %0, %23, %cst_25 {dimension_numbers = #tpu.dot_dimension_numbers<[1], [0], [0], [1], [0, 0, 1, 1], [], []>} : vector<8x16xf32>, vector<16x16xf32>, vector<8x16xf32> -> vector<8x16xf32>
    %cst_26 = arith.constant dense<0.000000e+00> : vector<8x8xf32>
    %25 = tpu.matmul %24, %1, %cst_26 {dimension_numbers = #tpu.dot_dimension_numbers<[1], [0], [0], [1], [0, 0, 1, 1], [], []>} : vector<8x16xf32>, vector<16x8xf32>, vector<8x8xf32> -> vector<8x8xf32>
    %c10 = arith.constant 10 : index
    %26 = memref.load %arg2[%c10] : memref<16xf32, #tpu.memory_space<smem>>
    %27 = vector.broadcast %26 : f32 to vector<8x8xf32>
    %28 = arith.addf %25, %27 : vector<8x8xf32>
    %c0_27 = arith.constant 0 : index
    %c10_28 = arith.constant 10 : index
    %c0_29 = arith.constant 0 : index
    %c0_30 = arith.constant 0 : index
    %29 = vector.load %arg6[%c0_27, %c10_28, %c0_29, %c0_30] : memref<1x16x8x8xf32, #tpu.memory_space<vmem>>, vector<1x1x8x8xf32>
    %30 = vector.shape_cast %29 : vector<1x1x8x8xf32> to vector<8x8xf32>
    %31 = vector.shape_cast %28 : vector<8x8xf32> to vector<1x1x8x8xf32>
    tpu.vector_store %arg6[%c0_27, %c10_28, %c0_29, %c0_30], %31 {strides = array<i32>} : memref<1x16x8x8xf32, #tpu.memory_space<vmem>>, vector<1x1x8x8xf32>,
    %c0_31 = arith.constant 0 : index
    %c3 = arith.constant 3 : index
    %c0_32 = arith.constant 0 : index
    %c0_33 = arith.constant 0 : index
    %32 = vector.load %arg3[%c0_31, %c3, %c0_32, %c0_33] : memref<1x4x16x16xf32, #tpu.memory_space<vmem>>, vector<1x1x16x16xf32>
    %33 = vector.shape_cast %32 : vector<1x1x16x16xf32> to vector<16x16xf32>
    %cst_34 = arith.constant dense<0.000000e+00> : vector<8x16xf32>
    %34 = tpu.matmul %0, %33, %cst_34 {dimension_numbers = #tpu.dot_dimension_numbers<[1], [0], [0], [1], [0, 0, 1, 1], [], []>} : vector<8x16xf32>, vector<16x16xf32>, vector<8x16xf32> -> vector<8x16xf32>
    %cst_35 = arith.constant dense<0.000000e+00> : vector<8x8xf32>
    %35 = tpu.matmul %34, %1, %cst_35 {dimension_numbers = #tpu.dot_dimension_numbers<[1], [0], [0], [1], [0, 0, 1, 1], [], []>} : vector<8x16xf32>, vector<16x8xf32>, vector<8x8xf32> -> vector<8x8xf32>
    %c15 = arith.constant 15 : index
    %36 = memref.load %arg2[%c15] : memref<16xf32, #tpu.memory_space<smem>>
    %37 = vector.broadcast %36 : f32 to vector<8x8xf32>
    %38 = arith.addf %35, %37 : vector<8x8xf32>
    %c0_36 = arith.constant 0 : index
    %c15_37 = arith.constant 15 : index
    %c0_38 = arith.constant 0 : index
    %c0_39 = arith.constant 0 : index
    %39 = vector.load %arg6[%c0_36, %c15_37, %c0_38, %c0_39] : memref<1x16x8x8xf32, #tpu.memory_space<vmem>>, vector<1x1x8x8xf32>
    %40 = vector.shape_cast %39 : vector<1x1x8x8xf32> to vector<8x8xf32>
    %41 = vector.shape_cast %38 : vector<8x8xf32> to vector<1x1x8x8xf32>
    tpu.vector_store %arg6[%c0_36, %c15_37, %c0_38, %c0_39], %41 {strides = array<i32>} : memref<1x16x8x8xf32, #tpu.memory_space<vmem>>, vector<1x1x8x8xf32>,
    %c1_40 = arith.constant 1 : index
    %42 = memref.load %arg2[%c1_40] : memref<16xf32, #tpu.memory_space<smem>>
    %43 = vector.broadcast %42 : f32 to vector<8x8xf32>
    %c0_41 = arith.constant 0 : index
    %c1_42 = arith.constant 1 : index
    %c0_43 = arith.constant 0 : index
    %c0_44 = arith.constant 0 : index
    %44 = vector.load %arg6[%c0_41, %c1_42, %c0_43, %c0_44] : memref<1x16x8x8xf32, #tpu.memory_space<vmem>>, vector<1x1x8x8xf32>
    %45 = vector.shape_cast %44 : vector<1x1x8x8xf32> to vector<8x8xf32>
    %46 = vector.shape_cast %43 : vector<8x8xf32> to vector<1x1x8x8xf32>
    tpu.vector_store %arg6[%c0_41, %c1_42, %c0_43, %c0_44], %46 {strides = array<i32>} : memref<1x16x8x8xf32, #tpu.memory_space<vmem>>, vector<1x1x8x8xf32>,
    %c2_45 = arith.constant 2 : index
    %47 = memref.load %arg2[%c2_45] : memref<16xf32, #tpu.memory_space<smem>>
    %48 = vector.broadcast %47 : f32 to vector<8x8xf32>
    %c0_46 = arith.constant 0 : index
    %c2_47 = arith.constant 2 : index
    %c0_48 = arith.constant 0 : index
    %c0_49 = arith.constant 0 : index
    %49 = vector.load %arg6[%c0_46, %c2_47, %c0_48, %c0_49] : memref<1x16x8x8xf32, #tpu.memory_space<vmem>>, vector<1x1x8x8xf32>
    %50 = vector.shape_cast %49 : vector<1x1x8x8xf32> to vector<8x8xf32>
    %51 = vector.shape_cast %48 : vector<8x8xf32> to vector<1x1x8x8xf32>
    tpu.vector_store %arg6[%c0_46, %c2_47, %c0_48, %c0_49], %51 {strides = array<i32>} : memref<1x16x8x8xf32, #tpu.memory_space<vmem>>, vector<1x1x8x8xf32>,
    %c3_50 = arith.constant 3 : index
    %52 = memref.load %arg2[%c3_50] : memref<16xf32, #tpu.memory_space<smem>>
    %53 = vector.broadcast %52 : f32 to vector<8x8xf32>
    %c0_51 = arith.constant 0 : index
    %c3_52 = arith.constant 3 : index
    %c0_53 = arith.constant 0 : index
    %c0_54 = arith.constant 0 : index
    %54 = vector.load %arg6[%c0_51, %c3_52, %c0_53, %c0_54] : memref<1x16x8x8xf32, #tpu.memory_space<vmem>>, vector<1x1x8x8xf32>
    %55 = vector.shape_cast %54 : vector<1x1x8x8xf32> to vector<8x8xf32>
    %56 = vector.shape_cast %53 : vector<8x8xf32> to vector<1x1x8x8xf32>
    tpu.vector_store %arg6[%c0_51, %c3_52, %c0_53, %c0_54], %56 {strides = array<i32>} : memref<1x16x8x8xf32, #tpu.memory_space<vmem>>, vector<1x1x8x8xf32>,
    %c4 = arith.constant 4 : index
    %57 = memref.load %arg2[%c4] : memref<16xf32, #tpu.memory_space<smem>>
    %58 = vector.broadcast %57 : f32 to vector<8x8xf32>
    %c0_55 = arith.constant 0 : index
    %c4_56 = arith.constant 4 : index
    %c0_57 = arith.constant 0 : index
    %c0_58 = arith.constant 0 : index
    %59 = vector.load %arg6[%c0_55, %c4_56, %c0_57, %c0_58] : memref<1x16x8x8xf32, #tpu.memory_space<vmem>>, vector<1x1x8x8xf32>
    %60 = vector.shape_cast %59 : vector<1x1x8x8xf32> to vector<8x8xf32>
    %61 = vector.shape_cast %58 : vector<8x8xf32> to vector<1x1x8x8xf32>
    tpu.vector_store %arg6[%c0_55, %c4_56, %c0_57, %c0_58], %61 {strides = array<i32>} : memref<1x16x8x8xf32, #tpu.memory_space<vmem>>, vector<1x1x8x8xf32>,
    %c6 = arith.constant 6 : index
    %62 = memref.load %arg2[%c6] : memref<16xf32, #tpu.memory_space<smem>>
    %63 = vector.broadcast %62 : f32 to vector<8x8xf32>
    %c0_59 = arith.constant 0 : index
    %c6_60 = arith.constant 6 : index
    %c0_61 = arith.constant 0 : index
    %c0_62 = arith.constant 0 : index
    %64 = vector.load %arg6[%c0_59, %c6_60, %c0_61, %c0_62] : memref<1x16x8x8xf32, #tpu.memory_space<vmem>>, vector<1x1x8x8xf32>
    %65 = vector.shape_cast %64 : vector<1x1x8x8xf32> to vector<8x8xf32>
    %66 = vector.shape_cast %63 : vector<8x8xf32> to vector<1x1x8x8xf32>
    tpu.vector_store %arg6[%c0_59, %c6_60, %c0_61, %c0_62], %66 {strides = array<i32>} : memref<1x16x8x8xf32, #tpu.memory_space<vmem>>, vector<1x1x8x8xf32>,
    %c7 = arith.constant 7 : index
    %67 = memref.load %arg2[%c7] : memref<16xf32, #tpu.memory_space<smem>>
    %68 = vector.broadcast %67 : f32 to vector<8x8xf32>
    %c0_63 = arith.constant 0 : index
    %c7_64 = arith.constant 7 : index
    %c0_65 = arith.constant 0 : index
    %c0_66 = arith.constant 0 : index
    %69 = vector.load %arg6[%c0_63, %c7_64, %c0_65, %c0_66] : memref<1x16x8x8xf32, #tpu.memory_space<vmem>>, vector<1x1x8x8xf32>
    %70 = vector.shape_cast %69 : vector<1x1x8x8xf32> to vector<8x8xf32>
    %71 = vector.shape_cast %68 : vector<8x8xf32> to vector<1x1x8x8xf32>
    tpu.vector_store %arg6[%c0_63, %c7_64, %c0_65, %c0_66], %71 {strides = array<i32>} : memref<1x16x8x8xf32, #tpu.memory_space<vmem>>, vector<1x1x8x8xf32>,
    %c8 = arith.constant 8 : index
    %72 = memref.load %arg2[%c8] : memref<16xf32, #tpu.memory_space<smem>>
    %73 = vector.broadcast %72 : f32 to vector<8x8xf32>
    %c0_67 = arith.constant 0 : index
    %c8_68 = arith.constant 8 : index
    %c0_69 = arith.constant 0 : index
    %c0_70 = arith.constant 0 : index
    %74 = vector.load %arg6[%c0_67, %c8_68, %c0_69, %c0_70] : memref<1x16x8x8xf32, #tpu.memory_space<vmem>>, vector<1x1x8x8xf32>
    %75 = vector.shape_cast %74 : vector<1x1x8x8xf32> to vector<8x8xf32>
    %76 = vector.shape_cast %73 : vector<8x8xf32> to vector<1x1x8x8xf32>
    tpu.vector_store %arg6[%c0_67, %c8_68, %c0_69, %c0_70], %76 {strides = array<i32>} : memref<1x16x8x8xf32, #tpu.memory_space<vmem>>, vector<1x1x8x8xf32>,
    %c9 = arith.constant 9 : index
    %77 = memref.load %arg2[%c9] : memref<16xf32, #tpu.memory_space<smem>>
    %78 = vector.broadcast %77 : f32 to vector<8x8xf32>
    %c0_71 = arith.constant 0 : index
    %c9_72 = arith.constant 9 : index
    %c0_73 = arith.constant 0 : index
    %c0_74 = arith.constant 0 : index
    %79 = vector.load %arg6[%c0_71, %c9_72, %c0_73, %c0_74] : memref<1x16x8x8xf32, #tpu.memory_space<vmem>>, vector<1x1x8x8xf32>
    %80 = vector.shape_cast %79 : vector<1x1x8x8xf32> to vector<8x8xf32>
    %81 = vector.shape_cast %78 : vector<8x8xf32> to vector<1x1x8x8xf32>
    tpu.vector_store %arg6[%c0_71, %c9_72, %c0_73, %c0_74], %81 {strides = array<i32>} : memref<1x16x8x8xf32, #tpu.memory_space<vmem>>, vector<1x1x8x8xf32>,
    %c11 = arith.constant 11 : index
    %82 = memref.load %arg2[%c11] : memref<16xf32, #tpu.memory_space<smem>>
    %83 = vector.broadcast %82 : f32 to vector<8x8xf32>
    %c0_75 = arith.constant 0 : index
    %c11_76 = arith.constant 11 : index
    %c0_77 = arith.constant 0 : index
    %c0_78 = arith.constant 0 : index
    %84 = vector.load %arg6[%c0_75, %c11_76, %c0_77, %c0_78] : memref<1x16x8x8xf32, #tpu.memory_space<vmem>>, vector<1x1x8x8xf32>
    %85 = vector.shape_cast %84 : vector<1x1x8x8xf32> to vector<8x8xf32>
    %86 = vector.shape_cast %83 : vector<8x8xf32> to vector<1x1x8x8xf32>
    tpu.vector_store %arg6[%c0_75, %c11_76, %c0_77, %c0_78], %86 {strides = array<i32>} : memref<1x16x8x8xf32, #tpu.memory_space<vmem>>, vector<1x1x8x8xf32>,
    %c12 = arith.constant 12 : index
    %87 = memref.load %arg2[%c12] : memref<16xf32, #tpu.memory_space<smem>>
    %88 = vector.broadcast %87 : f32 to vector<8x8xf32>
    %c0_79 = arith.constant 0 : index
    %c12_80 = arith.constant 12 : index
    %c0_81 = arith.constant 0 : index
    %c0_82 = arith.constant 0 : index
    %89 = vector.load %arg6[%c0_79, %c12_80, %c0_81, %c0_82] : memref<1x16x8x8xf32, #tpu.memory_space<vmem>>, vector<1x1x8x8xf32>
    %90 = vector.shape_cast %89 : vector<1x1x8x8xf32> to vector<8x8xf32>
    %91 = vector.shape_cast %88 : vector<8x8xf32> to vector<1x1x8x8xf32>
    tpu.vector_store %arg6[%c0_79, %c12_80, %c0_81, %c0_82], %91 {strides = array<i32>} : memref<1x16x8x8xf32, #tpu.memory_space<vmem>>, vector<1x1x8x8xf32>,
    %c13 = arith.constant 13 : index
    %92 = memref.load %arg2[%c13] : memref<16xf32, #tpu.memory_space<smem>>
    %93 = vector.broadcast %92 : f32 to vector<8x8xf32>
    %c0_83 = arith.constant 0 : index
    %c13_84 = arith.constant 13 : index
    %c0_85 = arith.constant 0 : index
    %c0_86 = arith.constant 0 : index
    %94 = vector.load %arg6[%c0_83, %c13_84, %c0_85, %c0_86] : memref<1x16x8x8xf32, #tpu.memory_space<vmem>>, vector<1x1x8x8xf32>
    %95 = vector.shape_cast %94 : vector<1x1x8x8xf32> to vector<8x8xf32>
    %96 = vector.shape_cast %93 : vector<8x8xf32> to vector<1x1x8x8xf32>
    tpu.vector_store %arg6[%c0_83, %c13_84, %c0_85, %c0_86], %96 {strides = array<i32>} : memref<1x16x8x8xf32, #tpu.memory_space<vmem>>, vector<1x1x8x8xf32>,
    %c14 = arith.constant 14 : index
    %97 = memref.load %arg2[%c14] : memref<16xf32, #tpu.memory_space<smem>>
    %98 = vector.broadcast %97 : f32 to vector<8x8xf32>
    %c0_87 = arith.constant 0 : index
    %c14_88 = arith.constant 14 : index
    %c0_89 = arith.constant 0 : index
    %c0_90 = arith.constant 0 : index
    %99 = vector.load %arg6[%c0_87, %c14_88, %c0_89, %c0_90] : memref<1x16x8x8xf32, #tpu.memory_space<vmem>>, vector<1x1x8x8xf32>
    %100 = vector.shape_cast %99 : vector<1x1x8x8xf32> to vector<8x8xf32>
    %101 = vector.shape_cast %98 : vector<8x8xf32> to vector<1x1x8x8xf32>
    tpu.vector_store %arg6[%c0_87, %c14_88, %c0_89, %c0_90], %101 {strides = array<i32>} : memref<1x16x8x8xf32, #tpu.memory_space<vmem>>, vector<1x1x8x8xf32>,
    return
  }
  func.func @transform_0(%arg0: i32, %arg1: i32) -> i32 {
    %c0_i32 = arith.constant 0 : i32
    %c0_i32_0 = arith.constant 0 : i32
    return %c0_i32 : i32
  }
  func.func @transform_1(%arg0: i32, %arg1: i32) -> (i32, i32, i32, i32) {
    %c0_i32 = arith.constant 0 : i32
    %c0_i32_0 = arith.constant 0 : i32
    %c0_i32_1 = arith.constant 0 : i32
    return %arg0, %c0_i32, %arg1, %c0_i32_0 : i32, i32, i32, i32
  }
  func.func @transform_2(%arg0: i32, %arg1: i32) -> (i32, i32) {
    %c0_i32 = arith.constant 0 : i32
    %c0_i32_0 = arith.constant 0 : i32
    %c0_i32_1 = arith.constant 0 : i32
    return %c0_i32, %c0_i32_0 : i32, i32
  }
  func.func @transform_3(%arg0: i32, %arg1: i32) -> (i32, i32) {
    %c0_i32 = arith.constant 0 : i32
    %c0_i32_0 = arith.constant 0 : i32
    %c0_i32_1 = arith.constant 0 : i32
    return %c0_i32, %c0_i32_0 : i32, i32
  }
  func.func @transform_4(%arg0: i32, %arg1: i32) -> (i32, i32, i32, i32) {
    %c0_i32 = arith.constant 0 : i32
    %c0_i32_0 = arith.constant 0 : i32
    %c0_i32_1 = arith.constant 0 : i32
    return %arg0, %c0_i32, %arg1, %c0_i32_0 : i32, i32, i32, i32
  }
}

</mosaic_0001>

<llo_original>
// kernel: tpu_custom_call.1
$region0: #{tpu_custom_call.1}
  #allocation0 [shape = 'u32[]', space=smem, size = 0x4, offset = 0x4, fixed_abs, tag = 'smem constant byte address 0x4 - core index']
  #allocation1 [shape = 'u32[72,128]{1,0:T(1,128)}', space=vmem, size = 0x9000, scoped, tag = 'internal scratch']
  %s0 = inlined_call_operand.vmem [shape: f32[16], index: 0, kind: input, shape index: {}]
  %s1 = inlined_call_operand.hbm [shape: f32[2,4,16,16], index: 1, kind: input, shape index: {}]
  %s2 = inlined_call_operand.vmem [shape: f32[8,16], index: 2, kind: input, shape index: {}]
  %s3 = inlined_call_operand.vmem [shape: f32[16,8], index: 3, kind: input, shape index: {}]
  %s4 = inlined_call_operand.vmem [shape: f32[2,16,8,8], index: 4, kind: output, shape index: {}]
  %s5 = sld [smem:[#allocation0]]
  $region57: #{tpu_custom_call.1} parent=0
    _
  %s7 = ssub.s32 1, %s5
  %s8 = scalar_select 0, %s7, %s5
  $region1: #{tpu_custom_call.1} parent=0
    #allocation2 [shape = 'u8[512]{0}', space=smem, size = 0x200, scoped, tag = 'input window, operand 0, single buffered']
    #allocation3 [shape = 's32[2]{0}', space=sflag, size = 0x8, scoped, tag = 'scoped memory for tpu_custom_call.1']
    #allocation4 [shape = 's32[2]{0}', space=sflag, size = 0x8, scoped, tag = 'scoped memory for tpu_custom_call.1']
    #allocation5 [shape = 'u8[65536]{0}', space=vmem, size = 0x10000, scoped, tag = 'input window, operand 1']
    %9 = vsyncpa [#allocation4], 0
    %10 = vsyncpa [#allocation3], 0
    %s11 = scalar_lea.sflag [#allocation3], 1
    %12 = vsyncpa %s11, 0
    loop: start=0, step=1, limit=4
    $region2: #{tpu_custom_call.1} parent=1 // loop_pre_header
      _
    $region3: #{tpu_custom_call.1} parent=1 // loop_header
      %s14 = sphi 0, %s18
      %p15 = scmp.ge.s32.totalorder %s14, 4
      %s21 = sphi 0, %s33
      %s22 = sphi 0, %s29
      %s23 = sphi 0, %s21
      %s24 = sphi 0, %s22
      %s25 = sphi 0, %s23
      %s26 = sphi 0, %s24
      %s34 = sphi 0, %s34
      %s36 = sphi 0, %s34
      %s37 = sphi 0, %s36
      %s51 = sphi 0, %s37
      %s59 = sphi 0, %s61
      %s62 = sphi 0, %s59
      %s63 = sphi 0, %s62
      %s79 = sphi 0, %s63
      %s83 = sphi 0, %s83
      %s85 = sphi 0, %s83
      %s86 = sphi 0, %s85
      %s100 = sphi 0, %s86
      %s104 = sphi 0, %s104
      %s106 = sphi 0, %s104
      %s107 = sphi 0, %s106
      %s121 = sphi 0, %s107
      %s129 = sphi 0, %s131
      %s132 = sphi 0, %s129
      %s133 = sphi 0, %s132
      %s149 = sphi 0, %s133
    $region4: #{tpu_custom_call.1} parent=1 // loop_header_branch
      %17 = sbr.rel (%p15) target = $region8
    $region5: #{tpu_custom_call.1} parent=1 // loop_body
      %s19 = ssub.s32 %s14, 1
      %s20 = ssub.s32 %s14, 2
      %s27 = sadd.s32 1, %s22
      %p28 = scmp.ge.s32.totalorder %s27, 1
      %s29 = scalar_select %p28, 0, %s27
      %s30 = sadd.s32 1, %s21
      %s31 = scalar_select %p28, %s30, %s21
      %p32 = scmp.ge.s32.totalorder %s31, 2
      %s33 = scalar_select %p32, 0, %s31
      %s35 = sadd.s32 %s34, 1
      %p38 = scmp.eq.s32.totalorder %s14, 1
      %p39 = scmp.ne.s32.totalorder %s34, %s36
      %p40 = scmp.eq.s32.totalorder %s14, 0
      %p41 = por %p39, %p40
      %p42 = scmp.ne.s32.totalorder %s34, %s36
      %p43 = scmp.eq.s32.totalorder %s19, 1
      %p44 = por %p42, %p43
      %p45 = scmp.ne.s32.totalorder %s36, %s37
      %p46 = scmp.eq.s32.totalorder %s19, 0
      %p47 = por %p45, %p46
      %p48 = scmp.ne.s32.totalorder %s36, %s37
      %p49 = scmp.eq.s32.totalorder %s20, 1
      %p50 = por %p48, %p49
      %p52 = scmp.ne.s32.totalorder %s37, %s51
      %p53 = scmp.eq.s32.totalorder %s20, 0
      %p54 = por %p52, %p53
      %s55 = ssub.s32 %s21, %s33
      %s56 = ssub.s32 %s22, %s29
      %s57 = sor.u32 %s55, %s56
      %p58 = scmp.eq.s32.totalorder %s57, 0
      %s60 = sadd.s32 %s59, 1
      %s61 = scalar_select %p58, %s59, %s60
      %p64 = pneg %p58
      %p65 = scmp.eq.s32.totalorder %s14, 1
      %p66 = por %p64, %p65
      %p67 = scmp.ne.s32.totalorder %s59, %s62
      %p68 = scmp.eq.s32.totalorder %s14, 0
      %p69 = por %p67, %p68
      %p70 = scmp.ne.s32.totalorder %s59, %s62
      %p71 = scmp.eq.s32.totalorder %s19, 1
      %p72 = por %p70, %p71
      %p73 = scmp.ne.s32.totalorder %s62, %s63
      %p74 = scmp.eq.s32.totalorder %s19, 0
      %p75 = por %p73, %p74
      %p76 = scmp.ne.s32.totalorder %s62, %s63
      %p77 = scmp.eq.s32.totalorder %s20, 1
      %p78 = por %p76, %p77
      %p80 = scmp.ne.s32.totalorder %s63, %s79
      %p81 = scmp.eq.s32.totalorder %s20, 0
      %p82 = por %p80, %p81
      %s84 = sadd.s32 %s83, 1
      %p87 = scmp.eq.s32.totalorder %s14, 1
      %p88 = scmp.ne.s32.totalorder %s83, %s85
      %p89 = scmp.eq.s32.totalorder %s14, 0
      %p90 = por %p88, %p89
      %p91 = scmp.ne.s32.totalorder %s83, %s85
      %p92 = scmp.eq.s32.totalorder %s19, 1
      %p93 = por %p91, %p92
      %p94 = scmp.ne.s32.totalorder %s85, %s86
      %p95 = scmp.eq.s32.totalorder %s19, 0
      %p96 = por %p94, %p95
      %p97 = scmp.ne.s32.totalorder %s85, %s86
      %p98 = scmp.eq.s32.totalorder %s20, 1
      %p99 = por %p97, %p98
      %p101 = scmp.ne.s32.totalorder %s86, %s100
      %p102 = scmp.eq.s32.totalorder %s20, 0
      %p103 = por %p101, %p102
      %s105 = sadd.s32 %s104, 1
      %p108 = scmp.eq.s32.totalorder %s14, 1
      %p109 = scmp.ne.s32.totalorder %s104, %s106
      %p110 = scmp.eq.s32.totalorder %s14, 0
      %p111 = por %p109, %p110
      %p112 = scmp.ne.s32.totalorder %s104, %s106
      %p113 = scmp.eq.s32.totalorder %s19, 1
      %p114 = por %p112, %p113
      %p115 = scmp.ne.s32.totalorder %s106, %s107
      %p116 = scmp.eq.s32.totalorder %s19, 0
      %p117 = por %p115, %p116
      %p118 = scmp.ne.s32.totalorder %s106, %s107
      %p119 = scmp.eq.s32.totalorder %s20, 1
      %p120 = por %p118, %p119
      %p122 = scmp.ne.s32.totalorder %s107, %s121
      %p123 = scmp.eq.s32.totalorder %s20, 0
      %p124 = por %p122, %p123
      %s125 = ssub.s32 %s21, %s33
      %s126 = ssub.s32 %s22, %s29
      %s127 = sor.u32 %s125, %s126
      %p128 = scmp.eq.s32.totalorder %s127, 0
      %s130 = sadd.s32 %s129, 1
      %s131 = scalar_select %p128, %s129, %s130
      %p134 = pneg %p128
      %p135 = scmp.eq.s32.totalorder %s14, 1
      %p136 = por %p134, %p135
      %p137 = scmp.ne.s32.totalorder %s129, %s132
      %p138 = scmp.eq.s32.totalorder %s14, 0
      %p139 = por %p137, %p138
      %p140 = scmp.ne.s32.totalorder %s129, %s132
      %p141 = scmp.eq.s32.totalorder %s19, 1
      %p142 = por %p140, %p141
      %p143 = scmp.ne.s32.totalorder %s132, %s133
      %p144 = scmp.eq.s32.totalorder %s19, 0
      %p145 = por %p143, %p144
      %p146 = scmp.ne.s32.totalorder %s132, %s133
      %p147 = scmp.eq.s32.totalorder %s20, 1
      %p148 = por %p146, %p147
      %p150 = scmp.ne.s32.totalorder %s133, %s149
      %p151 = scmp.eq.s32.totalorder %s20, 0
      %p152 = por %p150, %p151
      %p153 = scmp.le.s32.totalorder 1, %s14
      %p154 = scmp.lt.s32.totalorder %s14, 3
      %p155 = pnand %p153, %p154
      %p156 = pneg %p155
      // Predicated region
      $region9: #{tpu_custom_call.1} parent=5 // pred_check
        _
      $region10: #{tpu_custom_call.1} parent=5 // pred_check_branch
        %158 = sbr.rel (%p155) target = $region12
      $region11: #{tpu_custom_call.1} parent=5 // pred_region
        %s159 = ssub.s32 %s14, 1
        // Predicated region
        $region13: #{tpu_custom_call.1} parent=11 // pred_check
          %p160 = pneg %p47
        $region14: #{tpu_custom_call.1} parent=11 // pred_check_branch
          %162 = sbr.rel (%p160) target = $region16
        $region15: #{tpu_custom_call.1} parent=11 // pred_region
          %164 = vsyncadd [#allocation4], 0
          %s166 = sshll.u32 %s0, 4
          %s167 = int_to_ptr.vmem [resolvable:$true] %s166
          %169 = dma.vmem_to_smem %s167, 16, [#allocation2], [#allocation4]
        $region16: #{tpu_custom_call.1} parent=11 // pred_fallthru
          _
        // Predicated region
        $region17: #{tpu_custom_call.1} parent=11 // pred_check
          %p170 = pneg %p96
        $region18: #{tpu_custom_call.1} parent=11 // pred_check_branch
          %172 = sbr.rel (%p170) target = $region20
        $region19: #{tpu_custom_call.1} parent=11 // pred_region
          _
        $region20: #{tpu_custom_call.1} parent=11 // pred_fallthru
          _
        // Predicated region
        $region21: #{tpu_custom_call.1} parent=11 // pred_check
          %p173 = pneg %p117
        $region22: #{tpu_custom_call.1} parent=11 // pred_check_branch
          %175 = sbr.rel (%p173) target = $region24
        $region23: #{tpu_custom_call.1} parent=11 // pred_region
          _
        $region24: #{tpu_custom_call.1} parent=11 // pred_fallthru
          _
      $region12: #{tpu_custom_call.1} parent=5 // pred_fallthru
        _
      %p176 = scmp.lt.s32.totalorder %s14, 2
      // Predicated region
      $region25: #{tpu_custom_call.1} parent=5 // pred_check
        %p177 = pneg %p176
      $region26: #{tpu_custom_call.1} parent=5 // pred_check_branch
        %179 = sbr.rel (%p177) target = $region28
      $region27: #{tpu_custom_call.1} parent=5 // pred_region
        // Predicated region
        $region29: #{tpu_custom_call.1} parent=27 // pred_check
          %p180 = pneg %p69
        $region30: #{tpu_custom_call.1} parent=27 // pred_check_branch
          %182 = sbr.rel (%p180) target = $region32
        $region31: #{tpu_custom_call.1} parent=27 // pred_region
          %s183 = sand.u32 %s59, 1
          %s184 = scalar_lea.sflag [#allocation3], %s183
          %s185 = sand.u32 %s59, 1
          %s186 = smul.addr %s185, 64
          %s187 = scalar_lea.vmem [#allocation5], %s186
          %s188 = smul.u32 2, %s22
          %190 = vsyncadd %s184, 0
          %s191 = smul.addr %s21, 8
          %s192 = sadd.s32 %s188, %s191
          %s193 = smul.addr %s192, 8
          %s194 = scalar_lea.hbm %s1, %s193
          %s195 = sshll.u32 %s194, 4
          %s196 = int_to_ptr.hbm [resolvable:$true] %s195
          %s197 = sshll.u32 %s187, 4
          %s198 = int_to_ptr.vmem [resolvable:$true] %s197
          %203 = dma.hbm_to_vmem [thread:$0]  %s196, 1024, %s198, %s184, 128, 128, 8
        $region32: #{tpu_custom_call.1} parent=27 // pred_fallthru
          _
      $region28: #{tpu_custom_call.1} parent=5 // pred_fallthru
        _
      %p204 = scmp.le.s32.totalorder 1, %s14
      %p205 = scmp.lt.s32.totalorder %s14, 3
      %p206 = pnand %p204, %p205
      %p207 = pneg %p206
      // Predicated region
      $region33: #{tpu_custom_call.1} parent=5 // pred_check
        _
      $region34: #{tpu_custom_call.1} parent=5 // pred_check_branch
        %209 = sbr.rel (%p206) target = $region36
      $region35: #{tpu_custom_call.1} parent=5 // pred_region
        %s210 = ssub.s32 %s14, 1
        // Predicated region
        $region37: #{tpu_custom_call.1} parent=35 // pred_check
          %p211 = pneg %p47
        $region38: #{tpu_custom_call.1} parent=35 // pred_check_branch
          %213 = sbr.rel (%p211) target = $region40
        $region39: #{tpu_custom_call.1} parent=35 // pred_region
          %215 = dma.done [#allocation4], 16
        $region40: #{tpu_custom_call.1} parent=35 // pred_fallthru
          _
        %s216 = sand.u32 %s62, 1
        %s217 = scalar_lea.sflag [#allocation3], %s216
        %s218 = sand.u32 %s62, 1
        %s219 = smul.addr %s218, 64
        %s220 = scalar_lea.vmem [#allocation5], %s219
        // Predicated region
        $region41: #{tpu_custom_call.1} parent=35 // pred_check
          %p221 = pneg %p75
        $region42: #{tpu_custom_call.1} parent=35 // pred_check_branch
          %223 = sbr.rel (%p221) target = $region44
        $region43: #{tpu_custom_call.1} parent=35 // pred_region
          %225 = dma.done %s217, 1024
        $region44: #{tpu_custom_call.1} parent=35 // pred_fallthru
          _
        %226 = sfence
        %p227 = pneg %p47
        %p228 = pneg %p44
        %s229 = sand.u32 %s62, 1
        %s230 = scalar_lea.sflag [#allocation3], %s229
        %s231 = sand.u32 %s62, 1
        %s232 = smul.addr %s231, 64
        %s233 = scalar_lea.vmem [#allocation5], %s232
        %p234 = pneg %p75
        %p235 = pneg %p72
        %p236 = pneg %p96
        %p237 = pneg %p93
        %p238 = pneg %p117
        %p239 = pneg %p114
        %p240 = pneg %p145
        %p241 = pneg %p142
        %p242 = scmp.lt.s32.totalorder %s23, 1
        %s243 = scalar_select %p242, %s23, 1
        %p244 = scmp.lt.s32.totalorder %s24, 0
        %s245 = scalar_select %p244, %s24, 0
        %s246 = smul.addr %s243, 16
        %s247 = sadd.s32 %s245, %s246
        %s248 = smul.addr %s247, 8
        %s249 = scalar_lea.vmem %s4, %s248
        %s250 = smul.u32 2, %s24
        %p251 = scmp.lt.s32.totalorder %s23, 1
        %s252 = scalar_select %p251, %s23, 1
        %p253 = scmp.lt.s32.totalorder %s24, 0
        %s254 = scalar_select %p253, %s24, 0
        %s255 = smul.addr %s252, 16
        %s256 = sadd.s32 %s254, %s255
        %s257 = smul.addr %s256, 8
        %s258 = scalar_lea.vmem %s4, %s257
        %v259 = vld [vmem:[%s2] sm:$0xff]
        %v260 = vld [vmem:[%s3] sm:$0xff]
        %v261 = vld [vmem:[%s3 + $0x8] sm:$0xff]
        %v262 = vld [vmem:[%s220] sm:$0xff]
        %v263 = vld [vmem:[%s220 + $0x8] sm:$0xff]
        %vm264 = vcmask 130048
        %v266 = vsel %vm264, %v259, 0
        %268 = vmatpush.msra.mxu0 0.0
        %269 = vmatpush.msra.mxu0 0.0
        %270 = vmatpush.msra.mxu0 0.0
        %271 = vmatpush.msra.mxu0 0.0
        %272 = vmatpush.msra.mxu0 0.0
        %273 = vmatpush.msra.mxu0 0.0
        %274 = vmatpush.msra.mxu0 0.0
        %275 = vmatpush.msra.mxu0 0.0
        %276 = vmatpush.msra.mxu0 0.0
        %277 = vmatpush.msra.mxu0 0.0
        %278 = vmatpush.msra.mxu0 0.0
        %279 = vmatpush.msra.mxu0 0.0
        %280 = vmatpush.msra.mxu0 0.0
        %281 = vmatpush.msra.mxu0 0.0
        %282 = vmatpush.msra.mxu0 %v263
        %283 = vmatpush.msra.mxu0 %v262
        %284 = vmatmul.f32.gmra.mxu0 %v266
        %v285 = vpop.f32.mrf.mxu0
        %v286 = vadd.f32 0.0, %v285
        %287 = vdwg.mxu0
        %s288 = sld [smem:[#allocation2]]
        %v289 = vstv %s288
        %v291 = vsel %vm264, %v286, 0
        %293 = vmatpush.msra.mxu0 0.0
        %294 = vmatpush.msra.mxu0 0.0
        %295 = vmatpush.msra.mxu0 0.0
        %296 = vmatpush.msra.mxu0 0.0
        %297 = vmatpush.msra.mxu0 0.0
        %298 = vmatpush.msra.mxu0 0.0
        %299 = vmatpush.msra.mxu0 0.0
        %300 = vmatpush.msra.mxu0 0.0
        %301 = vmatpush.msra.mxu0 0.0
        %302 = vmatpush.msra.mxu0 0.0
        %303 = vmatpush.msra.mxu0 0.0
        %304 = vmatpush.msra.mxu0 0.0
        %305 = vmatpush.msra.mxu0 0.0
        %306 = vmatpush.msra.mxu0 0.0
        %307 = vmatpush.msra.mxu0 %v261
        %308 = vmatpush.msra.mxu0 %v260
        %309 = vmatmul.f32.gmra.mxu0 %v291
        %v310 = vpop.f32.mrf.mxu0
        %v311 = vadd.f32 %v289, %v310
        %312 = vdwg.mxu0
        %vm313 = vcmask 64512
        %314 = vst.msk [vmem:[%s258] sm:$0xff] %vm313, %v311
        %s315 = scalar_lea.vmem %s220, 16 [#allocation5]
        %v316 = vld [vmem:[%s315] sm:$0xff]
        %v317 = vld [vmem:[%s315 + $0x8] sm:$0xff]
        %318 = vmatpush.msra.mxu0 0.0
        %319 = vmatpush.msra.mxu0 0.0
        %320 = vmatpush.msra.mxu0 0.0
        %321 = vmatpush.msra.mxu0 0.0
        %322 = vmatpush.msra.mxu0 0.0
        %323 = vmatpush.msra.mxu0 0.0
        %324 = vmatpush.msra.mxu0 0.0
        %325 = vmatpush.msra.mxu0 0.0
        %326 = vmatpush.msra.mxu0 0.0
        %327 = vmatpush.msra.mxu0 0.0
        %328 = vmatpush.msra.mxu0 0.0
        %329 = vmatpush.msra.mxu0 0.0
        %330 = vmatpush.msra.mxu0 0.0
        %331 = vmatpush.msra.mxu0 0.0
        %332 = vmatpush.msra.mxu0 %v317
        %333 = vmatpush.msra.mxu0 %v316
        %334 = vmatmul.f32.gmra.mxu0 %v266
        %v335 = vpop.f32.mrf.mxu0
        %v336 = vadd.f32 0.0, %v335
        %337 = vdwg.mxu0
        %s338 = sld [smem:[#allocation2 + $0x5]]
        %v339 = vstv %s338
        %v341 = vsel %vm264, %v336, 0
        %343 = vmatpush.msra.mxu0 0.0
        %344 = vmatpush.msra.mxu0 0.0
        %345 = vmatpush.msra.mxu0 0.0
        %346 = vmatpush.msra.mxu0 0.0
        %347 = vmatpush.msra.mxu0 0.0
        %348 = vmatpush.msra.mxu0 0.0
        %349 = vmatpush.msra.mxu0 0.0
        %350 = vmatpush.msra.mxu0 0.0
        %351 = vmatpush.msra.mxu0 0.0
        %352 = vmatpush.msra.mxu0 0.0
        %353 = vmatpush.msra.mxu0 0.0
        %354 = vmatpush.msra.mxu0 0.0
        %355 = vmatpush.msra.mxu0 0.0
        %356 = vmatpush.msra.mxu0 0.0
        %357 = vmatpush.msra.mxu0 %v261
        %358 = vmatpush.msra.mxu0 %v260
        %359 = vmatmul.f32.gmra.mxu0 %v341
        %v360 = vpop.f32.mrf.mxu0
        %v361 = vadd.f32 %v339, %v360
        %362 = vdwg.mxu0
        %s363 = scalar_lea.vmem %s258, 40
        %364 = vst.msk [vmem:[%s363] sm:$0xff] %vm313, %v361
        %s365 = scalar_lea.vmem %s220, 32 [#allocation5]
        %v366 = vld [vmem:[%s365] sm:$0xff]
        %v367 = vld [vmem:[%s365 + $0x8] sm:$0xff]
        %368 = vmatpush.msra.mxu0 0.0
        %369 = vmatpush.msra.mxu0 0.0
        %370 = vmatpush.msra.mxu0 0.0
        %371 = vmatpush.msra.mxu0 0.0
        %372 = vmatpush.msra.mxu0 0.0
        %373 = vmatpush.msra.mxu0 0.0
        %374 = vmatpush.msra.mxu0 0.0
        %375 = vmatpush.msra.mxu0 0.0
        %376 = vmatpush.msra.mxu0 0.0
        %377 = vmatpush.msra.mxu0 0.0
        %378 = vmatpush.msra.mxu0 0.0
        %379 = vmatpush.msra.mxu0 0.0
        %380 = vmatpush.msra.mxu0 0.0
        %381 = vmatpush.msra.mxu0 0.0
        %382 = vmatpush.msra.mxu0 %v367
        %383 = vmatpush.msra.mxu0 %v366
        %384 = vmatmul.f32.gmra.mxu0 %v266
        %v385 = vpop.f32.mrf.mxu0
        %v386 = vadd.f32 0.0, %v385
        %387 = vdwg.mxu0
        %s388 = sld [smem:[#allocation2 + $0xa]]
        %v389 = vstv %s388
        %v391 = vsel %vm264, %v386, 0
        %393 = vmatpush.msra.mxu0 0.0
        %394 = vmatpush.msra.mxu0 0.0
        %395 = vmatpush.msra.mxu0 0.0
        %396 = vmatpush.msra.mxu0 0.0
        %397 = vmatpush.msra.mxu0 0.0
        %398 = vmatpush.msra.mxu0 0.0
        %399 = vmatpush.msra.mxu0 0.0
        %400 = vmatpush.msra.mxu0 0.0
        %401 = vmatpush.msra.mxu0 0.0
        %402 = vmatpush.msra.mxu0 0.0
        %403 = vmatpush.msra.mxu0 0.0
        %404 = vmatpush.msra.mxu0 0.0
        %405 = vmatpush.msra.mxu0 0.0
        %406 = vmatpush.msra.mxu0 0.0
        %407 = vmatpush.msra.mxu0 %v261
        %408 = vmatpush.msra.mxu0 %v260
        %409 = vmatmul.f32.gmra.mxu0 %v391
        %v410 = vpop.f32.mrf.mxu0
        %v411 = vadd.f32 %v389, %v410
        %412 = vdwg.mxu0
        %s413 = scalar_lea.vmem %s258, 80
        %414 = vst.msk [vmem:[%s413] sm:$0xff] %vm313, %v411
        %s415 = scalar_lea.vmem %s220, 48 [#allocation5]
        %v416 = vld [vmem:[%s415] sm:$0xff]
        %v417 = vld [vmem:[%s415 + $0x8] sm:$0xff]
        %418 = vmatpush.msra.mxu0 0.0
        %419 = vmatpush.msra.mxu0 0.0
        %420 = vmatpush.msra.mxu0 0.0
        %421 = vmatpush.msra.mxu0 0.0
        %422 = vmatpush.msra.mxu0 0.0
        %423 = vmatpush.msra.mxu0 0.0
        %424 = vmatpush.msra.mxu0 0.0
        %425 = vmatpush.msra.mxu0 0.0
        %426 = vmatpush.msra.mxu0 0.0
        %427 = vmatpush.msra.mxu0 0.0
        %428 = vmatpush.msra.mxu0 0.0
        %429 = vmatpush.msra.mxu0 0.0
        %430 = vmatpush.msra.mxu0 0.0
        %431 = vmatpush.msra.mxu0 0.0
        %432 = vmatpush.msra.mxu0 %v417
        %433 = vmatpush.msra.mxu0 %v416
        %434 = vmatmul.f32.gmra.mxu0 %v266
        %v435 = vpop.f32.mrf.mxu0
        %v436 = vadd.f32 0.0, %v435
        %437 = vdwg.mxu0
        %s438 = sld [smem:[#allocation2 + $0xf]]
        %v439 = vstv %s438
        %v441 = vsel %vm264, %v436, 0
        %443 = vmatpush.msra.mxu0 0.0
        %444 = vmatpush.msra.mxu0 0.0
        %445 = vmatpush.msra.mxu0 0.0
        %446 = vmatpush.msra.mxu0 0.0
        %447 = vmatpush.msra.mxu0 0.0
        %448 = vmatpush.msra.mxu0 0.0
        %449 = vmatpush.msra.mxu0 0.0
        %450 = vmatpush.msra.mxu0 0.0
        %451 = vmatpush.msra.mxu0 0.0
        %452 = vmatpush.msra.mxu0 0.0
        %453 = vmatpush.msra.mxu0 0.0
        %454 = vmatpush.msra.mxu0 0.0
        %455 = vmatpush.msra.mxu0 0.0
        %456 = vmatpush.msra.mxu0 0.0
        %457 = vmatpush.msra.mxu0 %v261
        %458 = vmatpush.msra.mxu0 %v260
        %459 = vmatmul.f32.gmra.mxu0 %v441
        %v460 = vpop.f32.mrf.mxu0
        %v461 = vadd.f32 %v439, %v460
        %462 = vdwg.mxu0
        %s463 = scalar_lea.vmem %s258, 120
        %464 = vst.msk [vmem:[%s463] sm:$0xff] %vm313, %v461
        %s465 = sld [smem:[#allocation2 + $0x1]]
        %v466 = vstv %s465
        %s467 = scalar_lea.vmem %s258, 8
        %468 = vst.msk [vmem:[%s467] sm:$0xff] %vm313, %v466
        %s469 = sld [smem:[#allocation2 + $0x2]]
        %v470 = vstv %s469
        %s471 = scalar_lea.vmem %s258, 16
        %472 = vst.msk [vmem:[%s471] sm:$0xff] %vm313, %v470
        %s473 = sld [smem:[#allocation2 + $0x3]]
        %v474 = vstv %s473
        %s475 = scalar_lea.vmem %s258, 24
        %476 = vst.msk [vmem:[%s475] sm:$0xff] %vm313, %v474
        %s477 = sld [smem:[#allocation2 + $0x4]]
        %v478 = vstv %s477
        %s479 = scalar_lea.vmem %s258, 32
        %480 = vst.msk [vmem:[%s479] sm:$0xff] %vm313, %v478
        %s481 = sld [smem:[#allocation2 + $0x6]]
        %v482 = vstv %s481
        %s483 = scalar_lea.vmem %s258, 48
        %484 = vst.msk [vmem:[%s483] sm:$0xff] %vm313, %v482
        %s485 = sld [smem:[#allocation2 + $0x7]]
        %v486 = vstv %s485
        %s487 = scalar_lea.vmem %s258, 56
        %488 = vst.msk [vmem:[%s487] sm:$0xff] %vm313, %v486
        %s489 = sld [smem:[#allocation2 + $0x8]]
        %v490 = vstv %s489
        %s491 = scalar_lea.vmem %s258, 64
        %492 = vst.msk [vmem:[%s491] sm:$0xff] %vm313, %v490
        %s493 = sld [smem:[#allocation2 + $0x9]]
        %v494 = vstv %s493
        %s495 = scalar_lea.vmem %s258, 72
        %496 = vst.msk [vmem:[%s495] sm:$0xff] %vm313, %v494
        %s497 = sld [smem:[#allocation2 + $0xb]]
        %v498 = vstv %s497
        %s499 = scalar_lea.vmem %s258, 88
        %500 = vst.msk [vmem:[%s499] sm:$0xff] %vm313, %v498
        %s501 = sld [smem:[#allocation2 + $0xc]]
        %v502 = vstv %s501
        %s503 = scalar_lea.vmem %s258, 96
        %504 = vst.msk [vmem:[%s503] sm:$0xff] %vm313, %v502
        %s505 = sld [smem:[#allocation2 + $0xd]]
        %v506 = vstv %s505
        %s507 = scalar_lea.vmem %s258, 104
        %508 = vst.msk [vmem:[%s507] sm:$0xff] %vm313, %v506
        %s509 = sld [smem:[#allocation2 + $0xe]]
        %v510 = vstv %s509
        %s511 = scalar_lea.vmem %s258, 112
        %512 = vst.msk [vmem:[%s511] sm:$0xff] %vm313, %v510
        %p513 = scmp.lt.s32.totalorder %s23, 1
        %s514 = scalar_select %p513, %s23, 1
        %p515 = scmp.lt.s32.totalorder %s24, 0
        %s516 = scalar_select %p515, %s24, 0
        %s517 = smul.addr %s514, 16
        %s518 = sadd.s32 %s516, %s517
        %s519 = smul.addr %s518, 8
        %s520 = scalar_lea.vmem %s4, %s519
        // Predicated region
        $region45: #{tpu_custom_call.1} parent=35 // pred_check
          %p521 = pneg %p142
        $region46: #{tpu_custom_call.1} parent=35 // pred_check_branch
          %523 = sbr.rel (%p521) target = $region48
        $region47: #{tpu_custom_call.1} parent=35 // pred_region
          _
        $region48: #{tpu_custom_call.1} parent=35 // pred_fallthru
          _
      $region36: #{tpu_custom_call.1} parent=5 // pred_fallthru
        _
      %p524 = scmp.le.s32.totalorder 2, %s14
      // Predicated region
      $region49: #{tpu_custom_call.1} parent=5 // pred_check
        %p525 = pneg %p524
      $region50: #{tpu_custom_call.1} parent=5 // pred_check_branch
        %527 = sbr.rel (%p525) target = $region52
      $region51: #{tpu_custom_call.1} parent=5 // pred_region
        %s528 = ssub.s32 %s14, 2
        // Predicated region
        $region53: #{tpu_custom_call.1} parent=51 // pred_check
          %p529 = pneg %p148
        $region54: #{tpu_custom_call.1} parent=51 // pred_check_branch
          %531 = sbr.rel (%p529) target = $region56
        $region55: #{tpu_custom_call.1} parent=51 // pred_region
          %p532 = scmp.lt.s32.totalorder %s25, 1
          %s533 = scalar_select %p532, %s25, 1
          %p534 = scmp.lt.s32.totalorder %s26, 0
          %s535 = scalar_select %p534, %s26, 0
          %s536 = smul.addr %s533, 16
          %s537 = sadd.s32 %s535, %s536
          %s538 = smul.addr %s537, 8
          %s539 = scalar_lea.vmem %s4, %s538
        $region56: #{tpu_custom_call.1} parent=51 // pred_fallthru
          _
      $region52: #{tpu_custom_call.1} parent=5 // pred_fallthru
        _
    $region6: #{tpu_custom_call.1} parent=1 // loop_footer
      %s18 = sadd.s32 1, %s14
    $region7: #{tpu_custom_call.1} parent=1 // loop_footer_branch
      %13 = sbr.rel target = $region3
    $region8: #{tpu_custom_call.1} parent=1 // loop_exit
      _
    %540 = vsyncpa [#allocation3], 1
    %s541 = scalar_lea.sflag [#allocation3], 1
    %542 = vsyncpa %s541, 1
    %543 = vsyncpa [#allocation4], 1
    %s544 = scalar_lea.sflag [#allocation4], 1
    %545 = vsyncpa %s544, 1

</llo_original>
